<compile_context>
chip_gen: v6e
topology: v6e:2x2x1
jax: 0.10.0
libtpu: 0.0.40
codegen_flags: <defaults>
</compile_context>

<pallas_src>
import jax
import jax.numpy as jnp
from jax.experimental import pallas as pl
from jax.experimental.pallas import tpu as pltpu


def _gamma_kernel(g_ref, x_ref, o_ref):
    # g_ref: VMEM (tm, 1) float32  -- per-plane gamma exponent
    # x_ref/o_ref: VMEM (tm, tn)   -- native-dtype, lane-dense tiles
    x = x_ref[...].astype(jnp.float32)
    g = g_ref[...]                              # (tm, 1), broadcasts over lanes
    xd = jnp.maximum(0.5 * x + 0.5, 0.0)        # denormalize; clamp base >= 0
    y = jnp.exp(g * jnp.log(xd))                # pow without the sign/NaN selects
    o_ref[...] = (2.0 * y - 1.0).astype(o_ref.dtype)


def _budgets():
    """Per-generation tile-size / VMEM-limit budgets (conservative default)."""
    kind = ""
    try:
        kind = jax.devices()[0].device_kind.lower()
    except Exception:
        pass
    if ("v5" in kind) or ("v6" in kind):
        return 8 * 1024 * 1024, 64 * 1024 * 1024   # 128 MiB physical VMEM
    return 4 * 1024 * 1024, 32 * 1024 * 1024       # v7x (64 MiB VMEM) / unknown


def gamma_forward(x, bias, rng_param, key, *, donate_input=False):
    """Pallas implementation of Gamma.forward.

    x:         (B, C, H, W), any float dtype, assumed normalized to [-1, 1]
    bias:      (1, C, 1, 1) float32  (nn.Parameter, init zeros)
    rng_param: (1, C, 1, 1) float32  (nn.Parameter 'range', init 0.001)
    key:       jax PRNG key for the uniform draw in [-1, 1)
    """
    B, C, H, W = x.shape
    rows, HW = B * C, H * W
    itemsize = jnp.dtype(x.dtype).itemsize

    # random_gamma = 1 + bias + 0.01 * |range| * U(-1, 1)   -> (B, C, 1, 1)
    u = 2.0 * jax.random.uniform(key, (B, C, 1, 1), dtype=jnp.float32) - 1.0
    gamma = (1.0 + bias.astype(jnp.float32)
             + 0.01 * jnp.abs(rng_param.astype(jnp.float32)) * u)
    g2 = gamma.reshape(rows, 1)

    # Native-dtype I/O: no pad, no dtype round-trip, no output slice.
    x2 = x.reshape(rows, HW)

    tile_bytes, vmem_limit = _budgets()

    # --- lane (last-dim) tiling: keep output blocks 128-aligned when possible ---
    if HW * itemsize <= tile_bytes or HW < 256:
        tn = HW  # full lane extent
        # TODO(synk): if HW % 128 != 0 stores are masked (vst.msk); repacking the
        # lane dim would cost an extra HBM pass, so we accept the masked stores.
    else:
        tn = min(HW // 128 * 128,
                 max(128, (tile_bytes // itemsize) // 128 * 128))

    # --- row (sublane) tiling: multiple of 8, or the full row extent ---
    tm_budget = max(8, (tile_bytes // (tn * itemsize)) // 8 * 8)
    tm = rows if rows <= tm_budget else tm_budget

    # Keep >1 grid step when there is enough work so both v7x TCs are used.
    if pl.cdiv(rows, tm) * pl.cdiv(HW, tn) == 1:
        if rows >= 16:
            tm = max(8, (tm // 2) // 8 * 8)
        elif HW >= 256 and HW % 256 == 0:
            tn //= 2

    grid = (pl.cdiv(rows, tm), pl.cdiv(HW, tn))
    n = rows * HW

    out2 = pl.pallas_call(
        _gamma_kernel,
        out_shape=jax.ShapeDtypeStruct((rows, HW), x.dtype),
        grid=grid,
        in_specs=[
            pl.BlockSpec((tm, 1), lambda i, j: (i, 0)),    # gamma column (VMEM)
            pl.BlockSpec((tm, tn), lambda i, j: (i, j)),   # x tile (lane-dense)
        ],
        out_specs=pl.BlockSpec((tm, tn), lambda i, j: (i, j)),
        compiler_params=pltpu.CompilerParams(
            dimension_semantics=("parallel", "parallel"),
            vmem_limit_bytes=vmem_limit,
        ),
        cost_estimate=pl.CostEstimate(
            flops=6 * n,
            transcendentals=2 * n,
            bytes_accessed=2 * n * itemsize + rows * 4,
        ),
        input_output_aliases=({1: 0} if donate_input else {}),
    )(g2, x2)

    return out2.reshape(B, C, H, W)


if __name__ == "__main__":
    B, C, H, W = 2, 4, 16, 16

    key = jax.random.PRNGKey(0)
    k_x, k_u = jax.random.split(key)

    # Inputs are assumed normalized to [-1, 1] (the module denormalizes first).
    x = jax.random.uniform(k_x, (B, C, H, W), dtype=jnp.float32,
                           minval=-1.0, maxval=1.0)

    # Deterministic parameter init matching the PyTorch module's __init__.
    bias = jnp.zeros((1, C, 1, 1), dtype=jnp.float32)
    rng_param = 0.001 * jnp.ones((1, C, 1, 1), dtype=jnp.float32)

    out = jax.block_until_ready(gamma_forward(x, bias, rng_param, k_u))

    # Reference check in plain JAX (same gamma draw, torch-style x ** gamma).
    u = 2.0 * jax.random.uniform(k_u, (B, C, 1, 1), dtype=jnp.float32) - 1.0
    gamma = 1.0 + bias + 0.01 * jnp.abs(rng_param) * u
    ref = 2.0 * jnp.power(jnp.maximum(0.5 * x + 0.5, 0.0), gamma) - 1.0
    assert jnp.allclose(out, ref, atol=1e-5, rtol=1e-5), "mismatch vs reference"

    print("KERNEL_OK")
</pallas_src>

<mosaic_0001>
module attributes {stable_mosaic.version = 11 : i64} {
  func.func @_gamma_kernel(%arg0: i32, %arg1: i32, %arg2: memref<8x1xf32, #tpu.memory_space<vmem>>, %arg3: memref<8x128xf32, #tpu.memory_space<vmem>>, %arg4: memref<8x128xf32, #tpu.memory_space<vmem>>) attributes {dimension_semantics = [#tpu.dimension_semantics<parallel>, #tpu.dimension_semantics<parallel>], iteration_bounds = array<i64: 1, 2>, scalar_prefetch = 0 : i64, scratch_operands = 0 : i64, tpu.core_type = #tpu.core_type<tc>, window_params = [{transform_indices = @transform_0, window_bounds = array<i64: 8, 1>}, {transform_indices = @transform_1, window_bounds = array<i64: 8, 128>}, {transform_indices = @transform_2, window_bounds = array<i64: 8, 128>}]} {
    %c0 = arith.constant 0 : index
    %c0_0 = arith.constant 0 : index
    %0 = vector.load %arg3[%c0, %c0_0] : memref<8x128xf32, #tpu.memory_space<vmem>>, vector<8x128xf32>
    %c0_1 = arith.constant 0 : index
    %c0_2 = arith.constant 0 : index
    %1 = vector.load %arg2[%c0_1, %c0_2] : memref<8x1xf32, #tpu.memory_space<vmem>>, vector<8x1xf32>
    %cst = arith.constant 5.000000e-01 : f32
    %2 = vector.broadcast %cst : f32 to vector<8x128xf32>
    %3 = arith.mulf %2, %0 : vector<8x128xf32>
    %cst_3 = arith.constant 5.000000e-01 : f32
    %4 = vector.broadcast %cst_3 : f32 to vector<8x128xf32>
    %5 = arith.addf %3, %4 : vector<8x128xf32>
    %cst_4 = arith.constant 0.000000e+00 : f32
    %6 = vector.broadcast %cst_4 : f32 to vector<8x128xf32>
    %7 = arith.maximumf %5, %6 : vector<8x128xf32>
    %8 = math.log %7 : vector<8x128xf32>
    %9 = vector.broadcast %1 : vector<8x1xf32> to vector<8x128xf32>
    %10 = arith.mulf %9, %8 : vector<8x128xf32>
    %11 = math.exp %10 : vector<8x128xf32>
    %cst_5 = arith.constant 2.000000e+00 : f32
    %12 = vector.broadcast %cst_5 : f32 to vector<8x128xf32>
    %13 = arith.mulf %12, %11 : vector<8x128xf32>
    %cst_6 = arith.constant 1.000000e+00 : f32
    %14 = vector.broadcast %cst_6 : f32 to vector<8x128xf32>
    %15 = arith.subf %13, %14 : vector<8x128xf32>
    %c0_7 = arith.constant 0 : index
    %c0_8 = arith.constant 0 : index
    %16 = vector.load %arg4[%c0_7, %c0_8] : memref<8x128xf32, #tpu.memory_space<vmem>>, vector<8x128xf32>
    tpu.vector_store %arg4[%c0_7, %c0_8], %15 {strides = array<i32>} : memref<8x128xf32, #tpu.memory_space<vmem>>, vector<8x128xf32>,
    return
  }
  func.func @transform_0(%arg0: i32, %arg1: i32) -> (i32, i32) {
    %c0_i32 = arith.constant 0 : i32
    %c0_i32_0 = arith.constant 0 : i32
    return %arg0, %c0_i32 : i32, i32
  }
  func.func @transform_1(%arg0: i32, %arg1: i32) -> (i32, i32) {
    %c0_i32 = arith.constant 0 : i32
    return %arg0, %arg1 : i32, i32
  }
  func.func @transform_2(%arg0: i32, %arg1: i32) -> (i32, i32) {
    %c0_i32 = arith.constant 0 : i32
    return %arg0, %arg1 : i32, i32
  }
}

</mosaic_0001>

<llo_original>
// kernel: tpu_custom_call.1
$region0: #{tpu_custom_call.1}
  #allocation0 [shape = 'u32[]', space=smem, size = 0x4, offset = 0x4, fixed_abs, tag = 'smem constant byte address 0x4 - core index']
  #allocation1 [shape = 'u32[144,128]{1,0:T(1,128)}', space=vmem, size = 0x12000, scoped, tag = 'internal scratch']
  %s0 = inlined_call_operand.vmem [shape: f32[8,1], index: 0, kind: input, shape index: {}]
  %s1 = inlined_call_operand.hbm [shape: f32[8,256], index: 1, kind: input, shape index: {}]
  %s2 = inlined_call_operand.hbm [shape: f32[8,256], index: 2, kind: output, shape index: {}]
  %s3 = sld [smem:[#allocation0]]
  $region45: #{tpu_custom_call.1} parent=0
    _
  %s5 = ssub.s32 1, %s3
  %s6 = scalar_select 0, %s5, %s3
  $region1: #{tpu_custom_call.1} parent=0
    #allocation2 [shape = 'u8[8192]{0}', space=vmem, size = 0x2000, scoped, tag = 'input window, operand 1']
    #allocation3 [shape = 's32[2]{0}', space=sflag, size = 0x8, scoped, tag = 'scoped memory for tpu_custom_call.1']
    #allocation4 [shape = 's32[2]{0}', space=sflag, size = 0x8, scoped, tag = 'scoped memory for tpu_custom_call.1']
    #allocation5 [shape = 'u8[8192]{0}', space=vmem, size = 0x2000, scoped, tag = 'output window, operand 0']
    %7 = vsyncpa [#allocation3], 0
    %s8 = scalar_lea.sflag [#allocation3], 1
    %9 = vsyncpa %s8, 0
    %10 = vsyncpa [#allocation4], 0
    %s11 = scalar_lea.sflag [#allocation4], 1
    %12 = vsyncpa %s11, 0
    loop: start=0, step=1, limit=4
    $region2: #{tpu_custom_call.1} parent=1 // loop_pre_header
      _
    $region3: #{tpu_custom_call.1} parent=1 // loop_header
      %s14 = sphi 0, %s18
      %p15 = scmp.ge.s32.totalorder %s14, 4
      %s21 = sphi 0, %s33
      %s22 = sphi 0, %s29
      %s23 = sphi 0, %s21
      %s24 = sphi 0, %s22
      %s25 = sphi 0, %s23
      %s26 = sphi 0, %s24
      %s36 = sphi 0, %s38
      %s39 = sphi 0, %s36
      %s40 = sphi 0, %s39
      %s56 = sphi 0, %s40
      %s64 = sphi 0, %s66
      %s67 = sphi 0, %s64
      %s68 = sphi 0, %s67
      %s84 = sphi 0, %s68
      %s92 = sphi 0, %s94
      %s95 = sphi 0, %s92
      %s96 = sphi 0, %s95
      %s112 = sphi 0, %s96
    $region4: #{tpu_custom_call.1} parent=1 // loop_header_branch
      %17 = sbr.rel (%p15) target = $region8
    $region5: #{tpu_custom_call.1} parent=1 // loop_body
      %s19 = ssub.s32 %s14, 1
      %s20 = ssub.s32 %s14, 2
      %s27 = sadd.s32 1, %s22
      %p28 = scmp.ge.s32.totalorder %s27, 2
      %s29 = scalar_select %p28, 0, %s27
      %s30 = sadd.s32 1, %s21
      %s31 = scalar_select %p28, %s30, %s21
      %p32 = scmp.ge.s32.totalorder %s31, 1
      %s33 = scalar_select %p32, 0, %s31
      %s34 = ssub.s32 %s21, %s33
      %p35 = scmp.eq.s32.totalorder %s34, 0
      %s37 = sadd.s32 %s36, 1
      %s38 = scalar_select %p35, %s36, %s37
      %p41 = pneg %p35
      %p42 = scmp.eq.s32.totalorder %s14, 1
      %p43 = por %p41, %p42
      %p44 = scmp.ne.s32.totalorder %s36, %s39
      %p45 = scmp.eq.s32.totalorder %s14, 0
      %p46 = por %p44, %p45
      %p47 = scmp.ne.s32.totalorder %s36, %s39
      %p48 = scmp.eq.s32.totalorder %s19, 1
      %p49 = por %p47, %p48
      %p50 = scmp.ne.s32.totalorder %s39, %s40
      %p51 = scmp.eq.s32.totalorder %s19, 0
      %p52 = por %p50, %p51
      %p53 = scmp.ne.s32.totalorder %s39, %s40
      %p54 = scmp.eq.s32.totalorder %s20, 1
      %p55 = por %p53, %p54
      %p57 = scmp.ne.s32.totalorder %s40, %s56
      %p58 = scmp.eq.s32.totalorder %s20, 0
      %p59 = por %p57, %p58
      %s60 = ssub.s32 %s21, %s33
      %s61 = ssub.s32 %s22, %s29
      %s62 = sor.u32 %s60, %s61
      %p63 = scmp.eq.s32.totalorder %s62, 0
      %s65 = sadd.s32 %s64, 1
      %s66 = scalar_select %p63, %s64, %s65
      %p69 = pneg %p63
      %p70 = scmp.eq.s32.totalorder %s14, 1
      %p71 = por %p69, %p70
      %p72 = scmp.ne.s32.totalorder %s64, %s67
      %p73 = scmp.eq.s32.totalorder %s14, 0
      %p74 = por %p72, %p73
      %p75 = scmp.ne.s32.totalorder %s64, %s67
      %p76 = scmp.eq.s32.totalorder %s19, 1
      %p77 = por %p75, %p76
      %p78 = scmp.ne.s32.totalorder %s67, %s68
      %p79 = scmp.eq.s32.totalorder %s19, 0
      %p80 = por %p78, %p79
      %p81 = scmp.ne.s32.totalorder %s67, %s68
      %p82 = scmp.eq.s32.totalorder %s20, 1
      %p83 = por %p81, %p82
      %p85 = scmp.ne.s32.totalorder %s68, %s84
      %p86 = scmp.eq.s32.totalorder %s20, 0
      %p87 = por %p85, %p86
      %s88 = ssub.s32 %s21, %s33
      %s89 = ssub.s32 %s22, %s29
      %s90 = sor.u32 %s88, %s89
      %p91 = scmp.eq.s32.totalorder %s90, 0
      %s93 = sadd.s32 %s92, 1
      %s94 = scalar_select %p91, %s92, %s93
      %p97 = pneg %p91
      %p98 = scmp.eq.s32.totalorder %s14, 1
      %p99 = por %p97, %p98
      %p100 = scmp.ne.s32.totalorder %s92, %s95
      %p101 = scmp.eq.s32.totalorder %s14, 0
      %p102 = por %p100, %p101
      %p103 = scmp.ne.s32.totalorder %s92, %s95
      %p104 = scmp.eq.s32.totalorder %s19, 1
      %p105 = por %p103, %p104
      %p106 = scmp.ne.s32.totalorder %s95, %s96
      %p107 = scmp.eq.s32.totalorder %s19, 0
      %p108 = por %p106, %p107
      %p109 = scmp.ne.s32.totalorder %s95, %s96
      %p110 = scmp.eq.s32.totalorder %s20, 1
      %p111 = por %p109, %p110
      %p113 = scmp.ne.s32.totalorder %s96, %s112
      %p114 = scmp.eq.s32.totalorder %s20, 0
      %p115 = por %p113, %p114
      %p116 = scmp.le.s32.totalorder 1, %s14
      %p117 = scmp.lt.s32.totalorder %s14, 3
      %p118 = pnand %p116, %p117
      %p119 = pneg %p118
      // Predicated region
      $region9: #{tpu_custom_call.1} parent=5 // pred_check
        _
      $region10: #{tpu_custom_call.1} parent=5 // pred_check_branch
        %121 = sbr.rel (%p118) target = $region12
      $region11: #{tpu_custom_call.1} parent=5 // pred_region
        %s122 = ssub.s32 %s14, 1
        // Predicated region
        $region13: #{tpu_custom_call.1} parent=11 // pred_check
          %p123 = pneg %p52
        $region14: #{tpu_custom_call.1} parent=11 // pred_check_branch
          %125 = sbr.rel (%p123) target = $region16
        $region15: #{tpu_custom_call.1} parent=11 // pred_region
          %p126 = scmp.lt.s32.totalorder %s23, 0
          %s127 = scalar_select %p126, %s23, 0
          %s128 = smul.addr %s127, 8
          %s129 = scalar_lea.vmem %s0, %s128
        $region16: #{tpu_custom_call.1} parent=11 // pred_fallthru
          _
      $region12: #{tpu_custom_call.1} parent=5 // pred_fallthru
        _
      %p130 = scmp.lt.s32.totalorder %s14, 2
      // Predicated region
      $region17: #{tpu_custom_call.1} parent=5 // pred_check
        %p131 = pneg %p130
      $region18: #{tpu_custom_call.1} parent=5 // pred_check_branch
        %133 = sbr.rel (%p131) target = $region20
      $region19: #{tpu_custom_call.1} parent=5 // pred_region
        // Predicated region
        $region21: #{tpu_custom_call.1} parent=19 // pred_check
          %p134 = pneg %p74
        $region22: #{tpu_custom_call.1} parent=19 // pred_check_branch
          %136 = sbr.rel (%p134) target = $region24
        $region23: #{tpu_custom_call.1} parent=19 // pred_region
          %s137 = sand.u32 %s64, 1
          %s138 = scalar_lea.sflag [#allocation3], %s137
          %s139 = sand.u32 %s64, 1
          %s140 = smul.addr %s139, 8
          %s141 = scalar_lea.vmem [#allocation2], %s140
          %s143 = ssub.s32 128, 128
          %144 = vsyncadd %s138, %s143
          %s145 = smul.addr %s21, 2
          %s146 = sadd.s32 %s22, %s145
          %s147 = smul.addr %s146, 128
          %s148 = scalar_lea.hbm %s1, %s147
          %s150 = sshll.u32 %s141, 4
          %s151 = int_to_ptr.vmem [resolvable:$true] %s150
          %153 = dma.hbm_to_vmem [thread:$0]  %s148, 128, %s151, %s138
        $region24: #{tpu_custom_call.1} parent=19 // pred_fallthru
          _
      $region20: #{tpu_custom_call.1} parent=5 // pred_fallthru
        _
      %p154 = scmp.le.s32.totalorder 1, %s14
      %p155 = scmp.lt.s32.totalorder %s14, 3
      %p156 = pnand %p154, %p155
      %p157 = pneg %p156
      // Predicated region
      $region25: #{tpu_custom_call.1} parent=5 // pred_check
        _
      $region26: #{tpu_custom_call.1} parent=5 // pred_check_branch
        %159 = sbr.rel (%p156) target = $region28
      $region27: #{tpu_custom_call.1} parent=5 // pred_region
        %s160 = ssub.s32 %s14, 1
        %s161 = sand.u32 %s67, 1
        %s162 = scalar_lea.sflag [#allocation3], %s161
        %s163 = sand.u32 %s67, 1
        %s164 = smul.addr %s163, 8
        %s165 = scalar_lea.vmem [#allocation2], %s164
        // Predicated region
        $region29: #{tpu_custom_call.1} parent=27 // pred_check
          %p166 = pneg %p80
        $region30: #{tpu_custom_call.1} parent=27 // pred_check_branch
          %168 = sbr.rel (%p166) target = $region32
        $region31: #{tpu_custom_call.1} parent=27 // pred_region
          %169 = dma.done %s162, 128
        $region32: #{tpu_custom_call.1} parent=27 // pred_fallthru
          _
        %p170 = scmp.lt.s32.totalorder %s23, 0
        %s171 = scalar_select %p170, %s23, 0
        %s172 = smul.addr %s171, 8
        %s173 = scalar_lea.vmem %s0, %s172
        %p174 = pneg %p52
        %p175 = pneg %p49
        %s176 = sand.u32 %s67, 1
        %s177 = scalar_lea.sflag [#allocation3], %s176
        %s178 = sand.u32 %s67, 1
        %s179 = smul.addr %s178, 8
        %s180 = scalar_lea.vmem [#allocation2], %s179
        %p181 = pneg %p80
        %p182 = pneg %p77
        %p183 = pneg %p108
        %p184 = pneg %p105
        %s185 = sand.u32 %s95, 1
        %s186 = scalar_lea.sflag [#allocation4], %s185
        %s187 = sand.u32 %s95, 1
        %s188 = smul.addr %s187, 8
        %s189 = scalar_lea.vmem [#allocation5], %s188
        %p190 = scmp.lt.s32.totalorder %s23, 0
        %s191 = scalar_select %p190, %s23, 0
        %s192 = smul.addr %s191, 8
        %s193 = scalar_lea.vmem %s0, %s192
        %v194 = vld [vmem:[%s165] sm:$0xff]
        %v195 = vld [vmem:[%s193] sm:$0xff]
        %v196 = vmul.f32 %v194, 0.5
        %v197 = vadd.f32 %v196, 0.5
        %v198 = vmax.f32 %v197, 0.0
        %v199 = vlog2.pop %v198
        %v200 = vmul.f32 %v199, 0.6931472
        %202 = vset.pattern.permute.xlu0 0
        %203 = vperm.xlu0 %202, %v195
        %v204 = vpop.permute.xlu0 %203
        %v206 = vmul.f32 %v204, %v200
        %v207 = vmul.f32 %v206, 1.442695
        %v208 = vpow.pop %v207
        %v209 = vmul.f32 %v208, 2.0
        %v210 = vsub.f32 %v209, 1.0
        %211 = vst [vmem:[%s189] sm:$0xff] %v210
        %s212 = sand.u32 %s95, 1
        %s213 = scalar_lea.sflag [#allocation4], %s212
        %s214 = sand.u32 %s95, 1
        %s215 = smul.addr %s214, 8
        %s216 = scalar_lea.vmem [#allocation5], %s215
        // Predicated region
        $region33: #{tpu_custom_call.1} parent=27 // pred_check
          %p217 = pneg %p105
        $region34: #{tpu_custom_call.1} parent=27 // pred_check_branch
          %219 = sbr.rel (%p217) target = $region36
        $region35: #{tpu_custom_call.1} parent=27 // pred_region
          %s221 = ssub.s32 128, 128
          %222 = vsyncadd %s213, %s221
          %s223 = smul.addr %s23, 2
          %s224 = sadd.s32 %s24, %s223
          %s225 = smul.addr %s224, 128
          %s226 = scalar_lea.hbm %s2, %s225
          %s228 = sshll.u32 %s216, 4
          %s229 = int_to_ptr.vmem [resolvable:$true] %s228
          %231 = dma.vmem_to_hbm [thread:$0]  %s229, 128, %s226, %s213
        $region36: #{tpu_custom_call.1} parent=27 // pred_fallthru
          _
      $region28: #{tpu_custom_call.1} parent=5 // pred_fallthru
        _
      %p232 = scmp.le.s32.totalorder 2, %s14
      // Predicated region
      $region37: #{tpu_custom_call.1} parent=5 // pred_check
        %p233 = pneg %p232
      $region38: #{tpu_custom_call.1} parent=5 // pred_check_branch
        %235 = sbr.rel (%p233) target = $region40
      $region39: #{tpu_custom_call.1} parent=5 // pred_region
        %s236 = ssub.s32 %s14, 2
        // Predicated region
        $region41: #{tpu_custom_call.1} parent=39 // pred_check
          %p237 = pneg %p111
        $region42: #{tpu_custom_call.1} parent=39 // pred_check_branch
          %239 = sbr.rel (%p237) target = $region44
        $region43: #{tpu_custom_call.1} parent=39 // pred_region
          %s240 = sand.u32 %s96, 1
          %s241 = scalar_lea.sflag [#allocation4], %s240
          %s242 = sand.u32 %s96, 1
          %s243 = smul.addr %s242, 8
          %s244 = scalar_lea.vmem [#allocation5], %s243
          %245 = dma.done %s241, 128
        $region44: #{tpu_custom_call.1} parent=39 // pred_fallthru
          _
      $region40: #{tpu_custom_call.1} parent=5 // pred_fallthru
        _
    $region6: #{tpu_custom_call.1} parent=1 // loop_footer
      %s18 = sadd.s32 1, %s14
    $region7: #{tpu_custom_call.1} parent=1 // loop_footer_branch
      %13 = sbr.rel target = $region3
    $region8: #{tpu_custom_call.1} parent=1 // loop_exit
      _
    %246 = vsyncpa [#allocation3], 1
    %s247 = scalar_lea.sflag [#allocation3], 1
    %248 = vsyncpa %s247, 1
    %249 = vsyncpa [#allocation4], 1
    %s250 = scalar_lea.sflag [#allocation4], 1
    %251 = vsyncpa %s250, 1

</llo_original>
